<compile_context>
chip_gen: v7x
topology: tpu7x:2x2x1
jax: 0.10.0
libtpu: 0.0.40
codegen_flags: <defaults>
</compile_context>

<pallas_src>
import functools

import jax
import jax.numpy as jnp
from jax import lax
from jax.experimental import pallas as pl
from jax.experimental.pallas import tpu as pltpu


def _self_attention_kernel(x_ref, wkq_ref, bkq_ref, o_ref, *, n_heads, b_blk):
    """One grid step handles `b_blk` batch elements; full (T, C) tiles in VMEM."""
    T, C = x_ref.shape[1], x_ref.shape[2]
    hd = C // n_heads
    neg_inf = jnp.float32(-jnp.inf)

    # Causal mask generated in-kernel, hoisted out of the batch/head loops.
    # tril(ones)[i, j] == 0  <=>  j > i, so "keep" where row >= col.
    row = lax.broadcasted_iota(jnp.int32, (T, T), 0)
    col = lax.broadcasted_iota(jnp.int32, (T, T), 1)
    causal = row >= col

    wkq = wkq_ref[...]          # (C, 2C)  pre-transposed (in, out): [Wk^T | Wq^T]
    bkq = bkq_ref[...]          # (1, 2C)  [bk | bq]

    for b in range(b_blk):                               # static unroll
        xb = x_ref[b].astype(jnp.float32)                # (T, C)

        # Fused K/Q projection: one MXU matmul, contraction over full C.
        kq = jnp.dot(xb, wkq, preferred_element_type=jnp.float32) + bkq  # (T, 2C)

        for h in range(n_heads):                         # static unroll
            kh = kq[:, h * hd:(h + 1) * hd]              # (T, hd)
            qh = kq[:, C + h * hd:C + (h + 1) * hd]      # (T, hd)
            vh = xb[:, h * hd:(h + 1) * hd]              # (T, hd) -- V = x

            # NOTE: module computes key @ query^T (not query @ key^T), no scaling.
            logits = lax.dot_general(
                kh, qh, (((1,), (1,)), ((), ())),
                preferred_element_type=jnp.float32)      # (T, T)
            masked = jnp.where(causal, logits, neg_inf)

            m = jnp.max(masked, axis=-1, keepdims=True)
            e = jnp.exp(masked - m)
            inv = pl.reciprocal(jnp.sum(e, axis=-1, keepdims=True), approx=True)
            att = e * inv

            yh = jnp.dot(att, vh, preferred_element_type=jnp.float32)   # (T, hd)
            # Direct per-head store into the output slab (no concatenate).
            o_ref[b, :, h * hd:(h + 1) * hd] = yh.astype(o_ref.dtype)


def self_attention(x, wk, bk, wq, bq, *, n_heads, context_length=None,
                   b_blk=None):
    """x: (B, T, C); wk/wq: (C, C) PyTorch (out, in) layout; bk/bq: (C,)."""
    B, T, C = x.shape
    assert C % n_heads == 0, "n_heads must divide embedding dim"
    if context_length is not None:
        assert T <= context_length, "sequence length exceeds context_length"

    # Pre-transpose + fuse the two projection matrices: (C, 2C), (in, out).
    wkq_t = jnp.concatenate([wk.T, wq.T], axis=1).astype(jnp.float32)   # (C, 2C)
    bkq = jnp.concatenate([bk, bq]).reshape(1, 2 * C).astype(jnp.float32)

    if b_blk is None:
        # Block several batch elements per grid step (amortize ~0.35us/step),
        # but keep >= 2 grid steps for megacore / dual-TC, and the x/out tile
        # under ~1 MiB (comfortably inside v7x's 32 MiB scoped VMEM default).
        bytes_per_batch = T * C * x.dtype.itemsize
        max_by_vmem = max(1, (1 << 20) // max(1, bytes_per_batch))
        max_by_grid = max(1, B // 2)
        b_blk = max(1, min(B, max_by_vmem, max_by_grid))
        while B % b_blk != 0:
            b_blk -= 1
    assert B % b_blk == 0
    grid = (B // b_blk,)

    kernel = functools.partial(_self_attention_kernel,
                               n_heads=n_heads, b_blk=b_blk)

    return pl.pallas_call(
        kernel,
        out_shape=jax.ShapeDtypeStruct((B, T, C), x.dtype),
        grid_spec=pltpu.PrefetchScalarGridSpec(
            num_scalar_prefetch=0,
            grid=grid,
            in_specs=[
                pl.BlockSpec((b_blk, T, C), lambda i: (i, 0, 0)),   # x
                pl.BlockSpec((C, 2 * C), lambda i: (0, 0)),          # [Wk^T|Wq^T]
                pl.BlockSpec((1, 2 * C), lambda i: (0, 0)),          # [bk|bq]
            ],
            out_specs=pl.BlockSpec((b_blk, T, C), lambda i: (i, 0, 0)),
        ),
        compiler_params=pltpu.CompilerParams(
            dimension_semantics=("parallel",)),
    )(x, wkq_t, bkq)


def self_attention_ref(x, wk, bk, wq, bq, mask, *, n_heads):
    """Pure-JAX reference mirroring the PyTorch forward, for validation."""
    B, T, C = x.shape
    hd = C // n_heads
    k = x @ wk.T + bk
    q = x @ wq.T + bq
    split = lambda a: a.reshape(B, T, n_heads, hd).transpose(0, 2, 1, 3)
    kh, qh, vh = split(k), split(q), split(x)
    logits = jnp.einsum("bhtd,bhsd->bhts", kh, qh)
    masked = jnp.where(mask[:T, :T][None, None] == 0, -jnp.inf, logits)
    att = jax.nn.softmax(masked, axis=-1)
    y = jnp.einsum("bhts,bhsd->bhtd", att, vh)
    return y.transpose(0, 2, 1, 3).reshape(B, T, C)


if __name__ == "__main__":
    # Config: embedding_dim=32, n_heads=4, context_length=8; input B=2, T=8, C=32.
    B, T, C, H = 2, 8, 32, 4
    context_length = 8

    key = jax.random.PRNGKey(0)
    kx, kwk, kbk, kwq, kbq = jax.random.split(key, 5)

    x = jax.random.normal(kx, (B, T, C), dtype=jnp.float32)
    wk = jax.random.normal(kwk, (C, C), dtype=jnp.float32) * 0.1
    bk = jax.random.normal(kbk, (C,), dtype=jnp.float32) * 0.1
    wq = jax.random.normal(kwq, (C, C), dtype=jnp.float32) * 0.1
    bq = jax.random.normal(kbq, (C,), dtype=jnp.float32) * 0.1
    mask = jnp.tril(jnp.ones((context_length, context_length), dtype=jnp.float32))

    out = self_attention(x, wk, bk, wq, bq, n_heads=H,
                         context_length=context_length)
    out = jax.block_until_ready(out)

    ref = self_attention_ref(x, wk, bk, wq, bq, mask, n_heads=H)
    assert out.shape == (B, T, C)
    # Tolerance accounts for the EUP approximate reciprocal in the softmax.
    assert jnp.allclose(out, ref, atol=5e-3, rtol=5e-3), "mismatch vs reference"

    print("KERNEL_OK")
</pallas_src>

<mosaic_0001>
module attributes {stable_mosaic.version = 11 : i64} {
  func.func @_self_attention_kernel(%arg0: i32, %arg1: memref<1x8x32xf32, #tpu.memory_space<vmem>>, %arg2: memref<32x64xf32, #tpu.memory_space<vmem>>, %arg3: memref<1x64xf32, #tpu.memory_space<vmem>>, %arg4: memref<1x8x32xf32, #tpu.memory_space<vmem>>) attributes {dimension_semantics = [#tpu.dimension_semantics<parallel>], iteration_bounds = array<i64: 2>, scalar_prefetch = 0 : i64, scratch_operands = 0 : i64, tpu.core_type = #tpu.core_type<tc>, window_params = [{transform_indices = @transform_0, window_bounds = array<i64: 1, 8, 32>}, {pipeline_mode = #tpu.pipeline_mode<synchronous>, transform_indices = @transform_1, window_bounds = array<i64: 32, 64>}, {pipeline_mode = #tpu.pipeline_mode<synchronous>, transform_indices = @transform_2, window_bounds = array<i64: 1, 64>}, {transform_indices = @transform_3, window_bounds = array<i64: 1, 8, 32>}]} {
    %0 = tpu.iota {dimensions = array<i32: 0>} : vector<8x8xi32>
    %1 = tpu.iota {dimensions = array<i32: 1>} : vector<8x8xi32>
    %2 = arith.cmpi sge, %0, %1 : vector<8x8xi32>
    %c0 = arith.constant 0 : index
    %c0_0 = arith.constant 0 : index
    %3 = vector.load %arg2[%c0, %c0_0] : memref<32x64xf32, #tpu.memory_space<vmem>>, vector<32x64xf32>
    %c0_1 = arith.constant 0 : index
    %c0_2 = arith.constant 0 : index
    %4 = vector.load %arg3[%c0_1, %c0_2] : memref<1x64xf32, #tpu.memory_space<vmem>>, vector<1x64xf32>
    %c0_3 = arith.constant 0 : index
    %c0_4 = arith.constant 0 : index
    %c0_5 = arith.constant 0 : index
    %5 = vector.load %arg1[%c0_3, %c0_4, %c0_5] : memref<1x8x32xf32, #tpu.memory_space<vmem>>, vector<1x8x32xf32>
    %6 = vector.shape_cast %5 : vector<1x8x32xf32> to vector<8x32xf32>
    %cst = arith.constant dense<0.000000e+00> : vector<8x64xf32>
    %7 = tpu.matmul %6, %3, %cst {dimension_numbers = #tpu.dot_dimension_numbers<[1], [0], [0], [1], [0, 0, 1, 1], [], []>} : vector<8x32xf32>, vector<32x64xf32>, vector<8x64xf32> -> vector<8x64xf32>
    %8 = vector.broadcast %4 : vector<1x64xf32> to vector<8x64xf32>
    %9 = arith.addf %7, %8 : vector<8x64xf32>
    %10 = vector.extract_strided_slice %9 {offsets = [0, 0], sizes = [8, 8], strides = [1, 1]} : vector<8x64xf32> to vector<8x8xf32>
    %11 = vector.extract_strided_slice %9 {offsets = [0, 32], sizes = [8, 8], strides = [1, 1]} : vector<8x64xf32> to vector<8x8xf32>
    %12 = vector.extract_strided_slice %6 {offsets = [0, 0], sizes = [8, 8], strides = [1, 1]} : vector<8x32xf32> to vector<8x8xf32>
    %cst_6 = arith.constant dense<0.000000e+00> : vector<8x8xf32>
    %13 = tpu.matmul %10, %11, %cst_6 {dimension_numbers = #tpu.dot_dimension_numbers<[1], [1], [0], [0], [0, 0, 1, 0], [], []>} : vector<8x8xf32>, vector<8x8xf32>, vector<8x8xf32> -> vector<8x8xf32>
    %cst_7 = arith.constant 0xFF800000 : f32
    %14 = vector.broadcast %cst_7 : f32 to vector<8x8xf32>
    %15 = arith.select %2, %13, %14 : vector<8x8xi1>, vector<8x8xf32>
    %cst_8 = arith.constant dense<0xFF800000> : vector<8xf32>
    %16 = vector.multi_reduction <maximumf>, %15, %cst_8 [1] : vector<8x8xf32> to vector<8xf32>
    %17 = vector.shape_cast %16 : vector<8xf32> to vector<8x1xf32>
    %18 = vector.broadcast %17 : vector<8x1xf32> to vector<8x8xf32>
    %19 = arith.subf %15, %18 : vector<8x8xf32>
    %20 = math.exp %19 : vector<8x8xf32>
    %cst_9 = arith.constant dense<0.000000e+00> : vector<8xf32>
    %21 = vector.multi_reduction <add>, %20, %cst_9 [1] : vector<8x8xf32> to vector<8xf32>
    %22 = vector.shape_cast %21 : vector<8xf32> to vector<8x1xf32>
    %23 = tpu.reciprocal %22 {approx = true} : vector<8x1xf32> -> vector<8x1xf32>
    %24 = vector.broadcast %23 : vector<8x1xf32> to vector<8x8xf32>
    %25 = arith.mulf %20, %24 : vector<8x8xf32>
    %cst_10 = arith.constant dense<0.000000e+00> : vector<8x8xf32>
    %26 = tpu.matmul %25, %12, %cst_10 {dimension_numbers = #tpu.dot_dimension_numbers<[1], [0], [0], [1], [0, 0, 1, 1], [], []>} : vector<8x8xf32>, vector<8x8xf32>, vector<8x8xf32> -> vector<8x8xf32>
    %c0_11 = arith.constant 0 : index
    %c0_12 = arith.constant 0 : index
    %c0_13 = arith.constant 0 : index
    %27 = vector.load %arg4[%c0_11, %c0_12, %c0_13] : memref<1x8x32xf32, #tpu.memory_space<vmem>>, vector<1x8x8xf32>
    %28 = vector.shape_cast %27 : vector<1x8x8xf32> to vector<8x8xf32>
    %29 = vector.shape_cast %26 : vector<8x8xf32> to vector<1x8x8xf32>
    tpu.vector_store %arg4[%c0_11, %c0_12, %c0_13], %29 {strides = array<i32>} : memref<1x8x32xf32, #tpu.memory_space<vmem>>, vector<1x8x8xf32>,
    %30 = vector.extract_strided_slice %9 {offsets = [0, 8], sizes = [8, 8], strides = [1, 1]} : vector<8x64xf32> to vector<8x8xf32>
    %31 = vector.extract_strided_slice %9 {offsets = [0, 40], sizes = [8, 8], strides = [1, 1]} : vector<8x64xf32> to vector<8x8xf32>
    %32 = vector.extract_strided_slice %6 {offsets = [0, 8], sizes = [8, 8], strides = [1, 1]} : vector<8x32xf32> to vector<8x8xf32>
    %cst_14 = arith.constant dense<0.000000e+00> : vector<8x8xf32>
    %33 = tpu.matmul %30, %31, %cst_14 {dimension_numbers = #tpu.dot_dimension_numbers<[1], [1], [0], [0], [0, 0, 1, 0], [], []>} : vector<8x8xf32>, vector<8x8xf32>, vector<8x8xf32> -> vector<8x8xf32>
    %cst_15 = arith.constant 0xFF800000 : f32
    %34 = vector.broadcast %cst_15 : f32 to vector<8x8xf32>
    %35 = arith.select %2, %33, %34 : vector<8x8xi1>, vector<8x8xf32>
    %cst_16 = arith.constant dense<0xFF800000> : vector<8xf32>
    %36 = vector.multi_reduction <maximumf>, %35, %cst_16 [1] : vector<8x8xf32> to vector<8xf32>
    %37 = vector.shape_cast %36 : vector<8xf32> to vector<8x1xf32>
    %38 = vector.broadcast %37 : vector<8x1xf32> to vector<8x8xf32>
    %39 = arith.subf %35, %38 : vector<8x8xf32>
    %40 = math.exp %39 : vector<8x8xf32>
    %cst_17 = arith.constant dense<0.000000e+00> : vector<8xf32>
    %41 = vector.multi_reduction <add>, %40, %cst_17 [1] : vector<8x8xf32> to vector<8xf32>
    %42 = vector.shape_cast %41 : vector<8xf32> to vector<8x1xf32>
    %43 = tpu.reciprocal %42 {approx = true} : vector<8x1xf32> -> vector<8x1xf32>
    %44 = vector.broadcast %43 : vector<8x1xf32> to vector<8x8xf32>
    %45 = arith.mulf %40, %44 : vector<8x8xf32>
    %cst_18 = arith.constant dense<0.000000e+00> : vector<8x8xf32>
    %46 = tpu.matmul %45, %32, %cst_18 {dimension_numbers = #tpu.dot_dimension_numbers<[1], [0], [0], [1], [0, 0, 1, 1], [], []>} : vector<8x8xf32>, vector<8x8xf32>, vector<8x8xf32> -> vector<8x8xf32>
    %c0_19 = arith.constant 0 : index
    %c0_20 = arith.constant 0 : index
    %c8 = arith.constant 8 : index
    %47 = vector.load %arg4[%c0_19, %c0_20, %c8] : memref<1x8x32xf32, #tpu.memory_space<vmem>>, vector<1x8x8xf32>
    %48 = vector.shape_cast %47 : vector<1x8x8xf32> to vector<8x8xf32>
    %49 = vector.shape_cast %46 : vector<8x8xf32> to vector<1x8x8xf32>
    tpu.vector_store %arg4[%c0_19, %c0_20, %c8], %49 {strides = array<i32>} : memref<1x8x32xf32, #tpu.memory_space<vmem>>, vector<1x8x8xf32>,
    %50 = vector.extract_strided_slice %9 {offsets = [0, 16], sizes = [8, 8], strides = [1, 1]} : vector<8x64xf32> to vector<8x8xf32>
    %51 = vector.extract_strided_slice %9 {offsets = [0, 48], sizes = [8, 8], strides = [1, 1]} : vector<8x64xf32> to vector<8x8xf32>
    %52 = vector.extract_strided_slice %6 {offsets = [0, 16], sizes = [8, 8], strides = [1, 1]} : vector<8x32xf32> to vector<8x8xf32>
    %cst_21 = arith.constant dense<0.000000e+00> : vector<8x8xf32>
    %53 = tpu.matmul %50, %51, %cst_21 {dimension_numbers = #tpu.dot_dimension_numbers<[1], [1], [0], [0], [0, 0, 1, 0], [], []>} : vector<8x8xf32>, vector<8x8xf32>, vector<8x8xf32> -> vector<8x8xf32>
    %cst_22 = arith.constant 0xFF800000 : f32
    %54 = vector.broadcast %cst_22 : f32 to vector<8x8xf32>
    %55 = arith.select %2, %53, %54 : vector<8x8xi1>, vector<8x8xf32>
    %cst_23 = arith.constant dense<0xFF800000> : vector<8xf32>
    %56 = vector.multi_reduction <maximumf>, %55, %cst_23 [1] : vector<8x8xf32> to vector<8xf32>
    %57 = vector.shape_cast %56 : vector<8xf32> to vector<8x1xf32>
    %58 = vector.broadcast %57 : vector<8x1xf32> to vector<8x8xf32>
    %59 = arith.subf %55, %58 : vector<8x8xf32>
    %60 = math.exp %59 : vector<8x8xf32>
    %cst_24 = arith.constant dense<0.000000e+00> : vector<8xf32>
    %61 = vector.multi_reduction <add>, %60, %cst_24 [1] : vector<8x8xf32> to vector<8xf32>
    %62 = vector.shape_cast %61 : vector<8xf32> to vector<8x1xf32>
    %63 = tpu.reciprocal %62 {approx = true} : vector<8x1xf32> -> vector<8x1xf32>
    %64 = vector.broadcast %63 : vector<8x1xf32> to vector<8x8xf32>
    %65 = arith.mulf %60, %64 : vector<8x8xf32>
    %cst_25 = arith.constant dense<0.000000e+00> : vector<8x8xf32>
    %66 = tpu.matmul %65, %52, %cst_25 {dimension_numbers = #tpu.dot_dimension_numbers<[1], [0], [0], [1], [0, 0, 1, 1], [], []>} : vector<8x8xf32>, vector<8x8xf32>, vector<8x8xf32> -> vector<8x8xf32>
    %c0_26 = arith.constant 0 : index
    %c0_27 = arith.constant 0 : index
    %c16 = arith.constant 16 : index
    %67 = vector.load %arg4[%c0_26, %c0_27, %c16] : memref<1x8x32xf32, #tpu.memory_space<vmem>>, vector<1x8x8xf32>
    %68 = vector.shape_cast %67 : vector<1x8x8xf32> to vector<8x8xf32>
    %69 = vector.shape_cast %66 : vector<8x8xf32> to vector<1x8x8xf32>
    tpu.vector_store %arg4[%c0_26, %c0_27, %c16], %69 {strides = array<i32>} : memref<1x8x32xf32, #tpu.memory_space<vmem>>, vector<1x8x8xf32>,
    %70 = vector.extract_strided_slice %9 {offsets = [0, 24], sizes = [8, 8], strides = [1, 1]} : vector<8x64xf32> to vector<8x8xf32>
    %71 = vector.extract_strided_slice %9 {offsets = [0, 56], sizes = [8, 8], strides = [1, 1]} : vector<8x64xf32> to vector<8x8xf32>
    %72 = vector.extract_strided_slice %6 {offsets = [0, 24], sizes = [8, 8], strides = [1, 1]} : vector<8x32xf32> to vector<8x8xf32>
    %cst_28 = arith.constant dense<0.000000e+00> : vector<8x8xf32>
    %73 = tpu.matmul %70, %71, %cst_28 {dimension_numbers = #tpu.dot_dimension_numbers<[1], [1], [0], [0], [0, 0, 1, 0], [], []>} : vector<8x8xf32>, vector<8x8xf32>, vector<8x8xf32> -> vector<8x8xf32>
    %cst_29 = arith.constant 0xFF800000 : f32
    %74 = vector.broadcast %cst_29 : f32 to vector<8x8xf32>
    %75 = arith.select %2, %73, %74 : vector<8x8xi1>, vector<8x8xf32>
    %cst_30 = arith.constant dense<0xFF800000> : vector<8xf32>
    %76 = vector.multi_reduction <maximumf>, %75, %cst_30 [1] : vector<8x8xf32> to vector<8xf32>
    %77 = vector.shape_cast %76 : vector<8xf32> to vector<8x1xf32>
    %78 = vector.broadcast %77 : vector<8x1xf32> to vector<8x8xf32>
    %79 = arith.subf %75, %78 : vector<8x8xf32>
    %80 = math.exp %79 : vector<8x8xf32>
    %cst_31 = arith.constant dense<0.000000e+00> : vector<8xf32>
    %81 = vector.multi_reduction <add>, %80, %cst_31 [1] : vector<8x8xf32> to vector<8xf32>
    %82 = vector.shape_cast %81 : vector<8xf32> to vector<8x1xf32>
    %83 = tpu.reciprocal %82 {approx = true} : vector<8x1xf32> -> vector<8x1xf32>
    %84 = vector.broadcast %83 : vector<8x1xf32> to vector<8x8xf32>
    %85 = arith.mulf %80, %84 : vector<8x8xf32>
    %cst_32 = arith.constant dense<0.000000e+00> : vector<8x8xf32>
    %86 = tpu.matmul %85, %72, %cst_32 {dimension_numbers = #tpu.dot_dimension_numbers<[1], [0], [0], [1], [0, 0, 1, 1], [], []>} : vector<8x8xf32>, vector<8x8xf32>, vector<8x8xf32> -> vector<8x8xf32>
    %c0_33 = arith.constant 0 : index
    %c0_34 = arith.constant 0 : index
    %c24 = arith.constant 24 : index
    %87 = vector.load %arg4[%c0_33, %c0_34, %c24] : memref<1x8x32xf32, #tpu.memory_space<vmem>>, vector<1x8x8xf32>
    %88 = vector.shape_cast %87 : vector<1x8x8xf32> to vector<8x8xf32>
    %89 = vector.shape_cast %86 : vector<8x8xf32> to vector<1x8x8xf32>
    tpu.vector_store %arg4[%c0_33, %c0_34, %c24], %89 {strides = array<i32>} : memref<1x8x32xf32, #tpu.memory_space<vmem>>, vector<1x8x8xf32>,
    return
  }
  func.func @transform_0(%arg0: i32) -> (i32, i32, i32) {
    %c0_i32 = arith.constant 0 : i32
    %c0_i32_0 = arith.constant 0 : i32
    %c0_i32_1 = arith.constant 0 : i32
    return %arg0, %c0_i32, %c0_i32_0 : i32, i32, i32
  }
  func.func @transform_1(%arg0: i32) -> (i32, i32) {
    %c0_i32 = arith.constant 0 : i32
    %c0_i32_0 = arith.constant 0 : i32
    %c0_i32_1 = arith.constant 0 : i32
    return %c0_i32, %c0_i32_0 : i32, i32
  }
  func.func @transform_2(%arg0: i32) -> (i32, i32) {
    %c0_i32 = arith.constant 0 : i32
    %c0_i32_0 = arith.constant 0 : i32
    %c0_i32_1 = arith.constant 0 : i32
    return %c0_i32, %c0_i32_0 : i32, i32
  }
  func.func @transform_3(%arg0: i32) -> (i32, i32, i32) {
    %c0_i32 = arith.constant 0 : i32
    %c0_i32_0 = arith.constant 0 : i32
    %c0_i32_1 = arith.constant 0 : i32
    return %arg0, %c0_i32, %c0_i32_0 : i32, i32, i32
  }
}

</mosaic_0001>

<llo_original>
// kernel: tpu_custom_call.1
$region0: #{tpu_custom_call.1}
  #allocation0 [shape = 'u32[]', space=smem, size = 0x4, offset = 0x4, fixed_abs, tag = 'smem constant byte address 0x4 - core index']
  #allocation1 [shape = 'u32[144,128]{1,0:T(1,128)}', space=vmem, size = 0x12000, scoped, tag = 'internal scratch']
  %s0 = inlined_call_operand.hbm [shape: f32[2,8,32], index: 0, kind: input, shape index: {}]
  %s1 = inlined_call_operand.hbm [shape: f32[32,64], index: 1, kind: input, shape index: {}]
  %s2 = inlined_call_operand.vmem [shape: f32[1,64], index: 2, kind: input, shape index: {}]
  %s3 = inlined_call_operand.hbm [shape: f32[2,8,32], index: 3, kind: output, shape index: {}]
  %s4 = sld [smem:[#allocation0]]
  $region53: #{tpu_custom_call.1} parent=0
    _
  %s6 = ssub.s32 1, %s4
  %s7 = scalar_select 0, %s6, %s4
  $region1: #{tpu_custom_call.1} parent=0
    #allocation2 [shape = 'u8[8192]{0}', space=vmem, size = 0x2000, scoped, tag = 'input window, operand 0']
    #allocation3 [shape = 's32[2]{0}', space=sflag, size = 0x8, scoped, tag = 'scoped memory for tpu_custom_call.1']
    #allocation4 [shape = 's32[2]{0}', space=sflag, size = 0x8, scoped, tag = 'scoped memory for tpu_custom_call.1']
    #allocation5 [shape = 'u8[16384]{0}', space=vmem, size = 0x4000, scoped, tag = 'input window, operand 1, single buffered']
    #allocation6 [shape = 's32[1]{0}', space=sflag, size = 0x4, scoped, tag = 'scoped memory for tpu_custom_call.1']
    #allocation7 [shape = 'u8[8192]{0}', space=vmem, size = 0x2000, scoped, tag = 'output window, operand 0']
    %8 = vsyncpa [#allocation3], 0
    %s9 = scalar_lea.sflag [#allocation3], 1
    %10 = vsyncpa %s9, 0
    %11 = vsyncpa [#allocation6], 0
    %12 = vsyncpa [#allocation4], 0
    %s13 = scalar_lea.sflag [#allocation4], 1
    %14 = vsyncpa %s13, 0
    loop: start=0, step=1, limit=4
    $region2: #{tpu_custom_call.1} parent=1 // loop_pre_header
      _
    $region3: #{tpu_custom_call.1} parent=1 // loop_header
      %s16 = sphi 0, %s20
      %p17 = scmp.ge.s32.totalorder %s16, 4
      %s26 = sphi 0, %s28
      %s29 = sphi 0, %s26
      %s30 = sphi 0, %s29
      %s46 = sphi 0, %s30
      %s50 = sphi 0, %s50
      %s52 = sphi 0, %s50
      %s53 = sphi 0, %s52
      %s67 = sphi 0, %s53
      %s71 = sphi 0, %s71
      %s73 = sphi 0, %s71
      %s74 = sphi 0, %s73
      %s88 = sphi 0, %s74
      %s94 = sphi 0, %s96
      %s97 = sphi 0, %s94
      %s98 = sphi 0, %s97
      %s114 = sphi 0, %s98
    $region4: #{tpu_custom_call.1} parent=1 // loop_header_branch
      %19 = sbr.rel (%p17) target = $region8
    $region5: #{tpu_custom_call.1} parent=1 // loop_body
      %s21 = ssub.s32 %s16, 1
      %s22 = ssub.s32 %s16, 2
      %s23 = sadd.s32 %s16, 1
      %s24 = ssub.s32 %s16, %s23
      %p25 = scmp.eq.s32.totalorder %s24, 0
      %s27 = sadd.s32 %s26, 1
      %s28 = scalar_select %p25, %s26, %s27
      %p31 = pneg %p25
      %p32 = scmp.eq.s32.totalorder %s16, 1
      %p33 = por %p31, %p32
      %p34 = scmp.ne.s32.totalorder %s26, %s29
      %p35 = scmp.eq.s32.totalorder %s16, 0
      %p36 = por %p34, %p35
      %p37 = scmp.ne.s32.totalorder %s26, %s29
      %p38 = scmp.eq.s32.totalorder %s21, 1
      %p39 = por %p37, %p38
      %p40 = scmp.ne.s32.totalorder %s29, %s30
      %p41 = scmp.eq.s32.totalorder %s21, 0
      %p42 = por %p40, %p41
      %p43 = scmp.ne.s32.totalorder %s29, %s30
      %p44 = scmp.eq.s32.totalorder %s22, 1
      %p45 = por %p43, %p44
      %p47 = scmp.ne.s32.totalorder %s30, %s46
      %p48 = scmp.eq.s32.totalorder %s22, 0
      %p49 = por %p47, %p48
      %s51 = sadd.s32 %s50, 1
      %p54 = scmp.eq.s32.totalorder %s16, 1
      %p55 = scmp.ne.s32.totalorder %s50, %s52
      %p56 = scmp.eq.s32.totalorder %s16, 0
      %p57 = por %p55, %p56
      %p58 = scmp.ne.s32.totalorder %s50, %s52
      %p59 = scmp.eq.s32.totalorder %s21, 1
      %p60 = por %p58, %p59
      %p61 = scmp.ne.s32.totalorder %s52, %s53
      %p62 = scmp.eq.s32.totalorder %s21, 0
      %p63 = por %p61, %p62
      %p64 = scmp.ne.s32.totalorder %s52, %s53
      %p65 = scmp.eq.s32.totalorder %s22, 1
      %p66 = por %p64, %p65
      %p68 = scmp.ne.s32.totalorder %s53, %s67
      %p69 = scmp.eq.s32.totalorder %s22, 0
      %p70 = por %p68, %p69
      %s72 = sadd.s32 %s71, 1
      %p75 = scmp.eq.s32.totalorder %s16, 1
      %p76 = scmp.ne.s32.totalorder %s71, %s73
      %p77 = scmp.eq.s32.totalorder %s16, 0
      %p78 = por %p76, %p77
      %p79 = scmp.ne.s32.totalorder %s71, %s73
      %p80 = scmp.eq.s32.totalorder %s21, 1
      %p81 = por %p79, %p80
      %p82 = scmp.ne.s32.totalorder %s73, %s74
      %p83 = scmp.eq.s32.totalorder %s21, 0
      %p84 = por %p82, %p83
      %p85 = scmp.ne.s32.totalorder %s73, %s74
      %p86 = scmp.eq.s32.totalorder %s22, 1
      %p87 = por %p85, %p86
      %p89 = scmp.ne.s32.totalorder %s74, %s88
      %p90 = scmp.eq.s32.totalorder %s22, 0
      %p91 = por %p89, %p90
      %s92 = ssub.s32 %s16, %s23
      %p93 = scmp.eq.s32.totalorder %s92, 0
      %s95 = sadd.s32 %s94, 1
      %s96 = scalar_select %p93, %s94, %s95
      %p99 = pneg %p93
      %p100 = scmp.eq.s32.totalorder %s16, 1
      %p101 = por %p99, %p100
      %p102 = scmp.ne.s32.totalorder %s94, %s97
      %p103 = scmp.eq.s32.totalorder %s16, 0
      %p104 = por %p102, %p103
      %p105 = scmp.ne.s32.totalorder %s94, %s97
      %p106 = scmp.eq.s32.totalorder %s21, 1
      %p107 = por %p105, %p106
      %p108 = scmp.ne.s32.totalorder %s97, %s98
      %p109 = scmp.eq.s32.totalorder %s21, 0
      %p110 = por %p108, %p109
      %p111 = scmp.ne.s32.totalorder %s97, %s98
      %p112 = scmp.eq.s32.totalorder %s22, 1
      %p113 = por %p111, %p112
      %p115 = scmp.ne.s32.totalorder %s98, %s114
      %p116 = scmp.eq.s32.totalorder %s22, 0
      %p117 = por %p115, %p116
      %p118 = scmp.le.s32.totalorder 1, %s16
      %p119 = scmp.lt.s32.totalorder %s16, 3
      %p120 = pnand %p118, %p119
      %p121 = pneg %p120
      // Predicated region
      $region9: #{tpu_custom_call.1} parent=5 // pred_check
        _
      $region10: #{tpu_custom_call.1} parent=5 // pred_check_branch
        %123 = sbr.rel (%p120) target = $region12
      $region11: #{tpu_custom_call.1} parent=5 // pred_region
        %s124 = ssub.s32 %s16, 1
        // Predicated region
        $region13: #{tpu_custom_call.1} parent=11 // pred_check
          %p125 = pneg %p63
        $region14: #{tpu_custom_call.1} parent=11 // pred_check_branch
          %127 = sbr.rel (%p125) target = $region16
        $region15: #{tpu_custom_call.1} parent=11 // pred_region
          %s129 = ssub.s32 512, 512
          %130 = vsyncadd [#allocation6], %s129
          %s131 = sshll.u32 [#allocation5], 4
          %s132 = int_to_ptr.vmem [resolvable:$true] %s131
          %137 = dma.hbm_to_vmem [thread:$0]  %s1, 512, %s132, [#allocation6], 128, 128, 8
        $region16: #{tpu_custom_call.1} parent=11 // pred_fallthru
          _
        // Predicated region
        $region17: #{tpu_custom_call.1} parent=11 // pred_check
          %p138 = pneg %p84
        $region18: #{tpu_custom_call.1} parent=11 // pred_check_branch
          %140 = sbr.rel (%p138) target = $region20
        $region19: #{tpu_custom_call.1} parent=11 // pred_region
          _
        $region20: #{tpu_custom_call.1} parent=11 // pred_fallthru
          _
      $region12: #{tpu_custom_call.1} parent=5 // pred_fallthru
        _
      %p141 = scmp.lt.s32.totalorder %s16, 2
      // Predicated region
      $region21: #{tpu_custom_call.1} parent=5 // pred_check
        %p142 = pneg %p141
      $region22: #{tpu_custom_call.1} parent=5 // pred_check_branch
        %144 = sbr.rel (%p142) target = $region24
      $region23: #{tpu_custom_call.1} parent=5 // pred_region
        // Predicated region
        $region25: #{tpu_custom_call.1} parent=23 // pred_check
          %p145 = pneg %p36
        $region26: #{tpu_custom_call.1} parent=23 // pred_check_branch
          %147 = sbr.rel (%p145) target = $region28
        $region27: #{tpu_custom_call.1} parent=23 // pred_region
          %s148 = sand.u32 %s26, 1
          %s149 = scalar_lea.sflag [#allocation3], %s148
          %s150 = sand.u32 %s26, 1
          %s151 = smul.addr %s150, 8
          %s152 = scalar_lea.vmem [#allocation2], %s151
          %s154 = ssub.s32 128, 128
          %155 = vsyncadd %s149, %s154
          %s156 = smul.addr %s16, 128
          %s157 = scalar_lea.hbm %s0, %s156
          %s159 = sshll.u32 %s152, 4
          %s160 = int_to_ptr.vmem [resolvable:$true] %s159
          %162 = dma.hbm_to_vmem [thread:$0]  %s157, 128, %s160, %s149
        $region28: #{tpu_custom_call.1} parent=23 // pred_fallthru
          _
      $region24: #{tpu_custom_call.1} parent=5 // pred_fallthru
        _
      %p163 = scmp.le.s32.totalorder 1, %s16
      %p164 = scmp.lt.s32.totalorder %s16, 3
      %p165 = pnand %p163, %p164
      %p166 = pneg %p165
      // Predicated region
      $region29: #{tpu_custom_call.1} parent=5 // pred_check
        _
      $region30: #{tpu_custom_call.1} parent=5 // pred_check_branch
        %168 = sbr.rel (%p165) target = $region32
      $region31: #{tpu_custom_call.1} parent=5 // pred_region
        %s169 = ssub.s32 %s16, 1
        %s170 = sand.u32 %s29, 1
        %s171 = scalar_lea.sflag [#allocation3], %s170
        %s172 = sand.u32 %s29, 1
        %s173 = smul.addr %s172, 8
        %s174 = scalar_lea.vmem [#allocation2], %s173
        // Predicated region
        $region33: #{tpu_custom_call.1} parent=31 // pred_check
          %p175 = pneg %p42
        $region34: #{tpu_custom_call.1} parent=31 // pred_check_branch
          %177 = sbr.rel (%p175) target = $region36
        $region35: #{tpu_custom_call.1} parent=31 // pred_region
          %178 = dma.done %s171, 128
        $region36: #{tpu_custom_call.1} parent=31 // pred_fallthru
          _
        // Predicated region
        $region37: #{tpu_custom_call.1} parent=31 // pred_check
          %p179 = pneg %p63
        $region38: #{tpu_custom_call.1} parent=31 // pred_check_branch
          %181 = sbr.rel (%p179) target = $region40
        $region39: #{tpu_custom_call.1} parent=31 // pred_region
          %182 = dma.done [#allocation6], 512
        $region40: #{tpu_custom_call.1} parent=31 // pred_fallthru
          _
        %s183 = sand.u32 %s29, 1
        %s184 = scalar_lea.sflag [#allocation3], %s183
        %s185 = sand.u32 %s29, 1
        %s186 = smul.addr %s185, 8
        %s187 = scalar_lea.vmem [#allocation2], %s186
        %p188 = pneg %p42
        %p189 = pneg %p39
        %p190 = pneg %p63
        %p191 = pneg %p60
        %p192 = pneg %p84
        %p193 = pneg %p81
        %p194 = pneg %p110
        %p195 = pneg %p107
        %s196 = sand.u32 %s97, 1
        %s197 = scalar_lea.sflag [#allocation4], %s196
        %s198 = sand.u32 %s97, 1
        %s199 = smul.addr %s198, 8
        %s200 = scalar_lea.vmem [#allocation7], %s199
        %v201 = vlaneseq
        %v202 = vshrl.u32 %v201, 7
        %v203 = vlaneseq
        %v204 = vand.u32 %v203, 127
        %vm205 = vcmp.ge.s32.totalorder %v202, %v204
        %v206 = vld [vmem:[#allocation5] sm:$0xff]
        %v207 = vld [vmem:[#allocation5 + $0x8] sm:$0xff]
        %v208 = vld [vmem:[#allocation5 + $0x10] sm:$0xff]
        %v209 = vld [vmem:[#allocation5 + $0x18] sm:$0xff]
        %v210 = vld [vmem:[%s2] sm:$0x1]
        %v211 = vld [vmem:[%s174] sm:$0xff]
        %v213 = vlaneseq
        %v214 = vshrl.u32 %v213, 7
        %v215 = vsub.s32 0, %v214
        %v216 = vrot.slane %v210, %v215
        %vm218 = vcmask 261120
        %v220 = vsel %vm218, %v211, 0
        %222 = vmatprep.subr.mxu0 0.0
        %223 = vmatpush1.msra.mxu0 %v206
        %224 = vmatprep.subr.mxu0 0.0
        %225 = vmatpush1.msra.mxu0 %v207
        %226 = vmatprep.subr.mxu0 0.0
        %227 = vmatpush1.msra.mxu0 %v208
        %228 = vmatprep.subr.mxu0 0.0
        %229 = vmatpush1.msra.mxu0 %v209
        %230 = vmatprep.subr.mxu0 0.0
        %231 = vmatpush1.msra.mxu0 0.0
        %232 = vmatprep.subr.mxu0 0.0
        %233 = vmatpush1.msra.mxu0 0.0
        %234 = vmatprep.subr.mxu0 0.0
        %235 = vmatpush1.msra.mxu0 0.0
        %236 = vmatprep.subr.mxu0 0.0
        %237 = vmatpush1.msra.mxu0 0.0
        %238 = vmatprep.subr.mxu0 0.0
        %239 = vmatpush1.msra.mxu0 0.0
        %240 = vmatprep.subr.mxu0 0.0
        %241 = vmatpush1.msra.mxu0 0.0
        %242 = vmatprep.subr.mxu0 0.0
        %243 = vmatpush1.msra.mxu0 0.0
        %244 = vmatprep.subr.mxu0 0.0
        %245 = vmatpush1.msra.mxu0 0.0
        %246 = vmatprep.subr.mxu0 0.0
        %247 = vmatpush1.msra.mxu0 0.0
        %248 = vmatprep.subr.mxu0 0.0
        %249 = vmatpush1.msra.mxu0 0.0
        %250 = vmatprep.subr.mxu0 0.0
        %251 = vmatpush1.msra.mxu0 0.0
        %252 = vmatprep.subr.mxu0 0.0
        %253 = vmatpush1.msra.mxu0 0.0
        %254 = vmatprep.subr.mxu0 0.0
        %255 = vmatpush1.msra.mxu0 0.0
        %256 = vmatprep.subr.mxu0 0.0
        %257 = vmatpush1.msra.mxu0 0.0
        %258 = vmatprep.subr.mxu0 0.0
        %259 = vmatpush1.msra.mxu0 0.0
        %260 = vmatprep.subr.mxu0 0.0
        %261 = vmatpush1.msra.mxu0 0.0
        %262 = vmatprep.subr.mxu0 0.0
        %263 = vmatpush1.msra.mxu0 0.0
        %264 = vmatprep.subr.mxu0 0.0
        %265 = vmatpush1.msra.mxu0 0.0
        %266 = vmatprep.subr.mxu0 0.0
        %267 = vmatpush1.msra.mxu0 0.0
        %268 = vmatprep.subr.mxu0 0.0
        %269 = vmatpush1.msra.mxu0 0.0
        %270 = vmatprep.subr.mxu0 0.0
        %271 = vmatpush1.msra.mxu0 0.0
        %272 = vmatprep.subr.mxu0 0.0
        %273 = vmatpush1.msra.mxu0 0.0
        %274 = vmatprep.subr.mxu0 0.0
        %275 = vmatpush1.msra.mxu0 0.0
        %276 = vmatprep.subr.mxu0 0.0
        %277 = vmatpush1.msra.mxu0 0.0
        %278 = vmatprep.subr.mxu0 0.0
        %279 = vmatpush1.msra.mxu0 0.0
        %280 = vmatprep.subr.mxu0 0.0
        %281 = vmatpush1.msra.mxu0 0.0
        %282 = vmatprep.subr.mxu0 0.0
        %283 = vmatpush1.msra.mxu0 0.0
        %284 = vmatprep.subr.mxu0 0.0
        %285 = vmatpush1.msra.mxu0 0.0
        %286 = vmatprep.mubr.f32.mxu0 0.0
        %287 = vmatmul.mubr.f32.gmra.mrb[0].mxu0 %v220
        %v288 = vpop.f32.mrb[0].mxu0
        %v289 = vadd.f32 %v216, %v288
        %v290 = vpop.f32.mrb[0].mxu0
        %291 = vdwg.mxu0
        %293 = vrot.lane.b32.xlu0 %v289, 96
        %v294 = vpop.permute.xlu0 %293
        %vm295 = vcmask 64512
        %v296 = vsel %vm295, %v289, 0
        %v298 = vsel %vm295, %v294, 0
        %300 = vmatprep.subr.mxu0 0.0
        %301 = vmatpush1.xpose.msra.mxu0 %v298
        %302 = vmatprep.subr.mxu0 0.0
        %303 = vmatpush1.xpose.msra.mxu0 0.0
        %304 = vmatprep.subr.mxu0 0.0
        %305 = vmatpush1.xpose.msra.mxu0 0.0
        %306 = vmatprep.subr.mxu0 0.0
        %307 = vmatpush1.xpose.msra.mxu0 0.0
        %308 = vmatprep.subr.mxu0 0.0
        %309 = vmatpush1.xpose.msra.mxu0 0.0
        %310 = vmatprep.subr.mxu0 0.0
        %311 = vmatpush1.xpose.msra.mxu0 0.0
        %312 = vmatprep.subr.mxu0 0.0
        %313 = vmatpush1.xpose.msra.mxu0 0.0
        %314 = vmatprep.subr.mxu0 0.0
        %315 = vmatpush1.xpose.msra.mxu0 0.0
        %316 = vmatprep.subr.mxu0 0.0
        %317 = vmatpush1.xpose.msra.mxu0 0.0
        %318 = vmatprep.subr.mxu0 0.0
        %319 = vmatpush1.xpose.msra.mxu0 0.0
        %320 = vmatprep.subr.mxu0 0.0
        %321 = vmatpush1.xpose.msra.mxu0 0.0
        %322 = vmatprep.subr.mxu0 0.0
        %323 = vmatpush1.xpose.msra.mxu0 0.0
        %324 = vmatprep.subr.mxu0 0.0
        %325 = vmatpush1.xpose.msra.mxu0 0.0
        %326 = vmatprep.subr.mxu0 0.0
        %327 = vmatpush1.xpose.msra.mxu0 0.0
        %328 = vmatprep.subr.mxu0 0.0
        %329 = vmatpush1.xpose.msra.mxu0 0.0
        %330 = vmatprep.subr.mxu0 0.0
        %331 = vmatpush1.xpose.msra.mxu0 0.0
        %332 = vmatprep.subr.mxu0 0.0
        %333 = vmatpush1.xpose.msra.mxu0 0.0
        %334 = vmatprep.subr.mxu0 0.0
        %335 = vmatpush1.xpose.msra.mxu0 0.0
        %336 = vmatprep.subr.mxu0 0.0
        %337 = vmatpush1.xpose.msra.mxu0 0.0
        %338 = vmatprep.subr.mxu0 0.0
        %339 = vmatpush1.xpose.msra.mxu0 0.0
        %340 = vmatprep.subr.mxu0 0.0
        %341 = vmatpush1.xpose.msra.mxu0 0.0
        %342 = vmatprep.subr.mxu0 0.0
        %343 = vmatpush1.xpose.msra.mxu0 0.0
        %344 = vmatprep.subr.mxu0 0.0
        %345 = vmatpush1.xpose.msra.mxu0 0.0
        %346 = vmatprep.subr.mxu0 0.0
        %347 = vmatpush1.xpose.msra.mxu0 0.0
        %348 = vmatprep.subr.mxu0 0.0
        %349 = vmatpush1.xpose.msra.mxu0 0.0
        %350 = vmatprep.subr.mxu0 0.0
        %351 = vmatpush1.xpose.msra.mxu0 0.0
        %352 = vmatprep.subr.mxu0 0.0
        %353 = vmatpush1.xpose.msra.mxu0 0.0
        %354 = vmatprep.subr.mxu0 0.0
        %355 = vmatpush1.xpose.msra.mxu0 0.0
        %356 = vmatprep.subr.mxu0 0.0
        %357 = vmatpush1.xpose.msra.mxu0 0.0
        %358 = vmatprep.subr.mxu0 0.0
        %359 = vmatpush1.xpose.msra.mxu0 0.0
        %360 = vmatprep.subr.mxu0 0.0
        %361 = vmatpush1.xpose.msra.mxu0 0.0
        %362 = vmatprep.subr.mxu0 0.0
        %363 = vmatpush1.xpose.msra.mxu0 0.0
        %364 = vmatprep.mubr.f32.mxu0 0.0
        %365 = vmatmul.mubr.f32.gmra.mrb[0].mxu0 %v296
        %v366 = vpop.f32.mrb[0].mxu0
        %v367 = vadd.f32 0.0, %v366
        %v368 = vpop.f32.mrb[0].mxu0
        %369 = vdwg.mxu0
        %v370 = vsel %vm205, %v367, -inf
        %v371 = vsel %vm295, %v370, -inf
        %372 = vmax.xlane.f32.xlu0 %v371
        %v373 = vpop.xlane.xlu0 %372
        %v374 = vsub.f32 %v370, %v373
        %v375 = vmul.f32 %v374, 1.442695
        %v376 = vpow.pop %v375
        %v377 = vsel %vm295, %v376, 0.0
        %378 = vadd.xlane.f32.xlu0 %v377
        %v379 = vpop.xlane.xlu0 %378
        %v380 = vrcp.pop %v379
        %v381 = vmul.f32 %v376, %v380
        %v383 = vsel %vm295, %v381, 0
        %385 = vmatprep.subr.mxu0 0.0
        %386 = vmatpush1.msra.mxu0 %v211
        %387 = vmatprep.subr.mxu0 0.0
        %388 = vmatpush1.msra.mxu0 0.0
        %389 = vmatprep.subr.mxu0 0.0
        %390 = vmatpush1.msra.mxu0 0.0
        %391 = vmatprep.subr.mxu0 0.0
        %392 = vmatpush1.msra.mxu0 0.0
        %393 = vmatprep.subr.mxu0 0.0
        %394 = vmatpush1.msra.mxu0 0.0
        %395 = vmatprep.subr.mxu0 0.0
        %396 = vmatpush1.msra.mxu0 0.0
        %397 = vmatprep.subr.mxu0 0.0
        %398 = vmatpush1.msra.mxu0 0.0
        %399 = vmatprep.subr.mxu0 0.0
        %400 = vmatpush1.msra.mxu0 0.0
        %401 = vmatprep.subr.mxu0 0.0
        %402 = vmatpush1.msra.mxu0 0.0
        %403 = vmatprep.subr.mxu0 0.0
        %404 = vmatpush1.msra.mxu0 0.0
        %405 = vmatprep.subr.mxu0 0.0
        %406 = vmatpush1.msra.mxu0 0.0
        %407 = vmatprep.subr.mxu0 0.0
        %408 = vmatpush1.msra.mxu0 0.0
        %409 = vmatprep.subr.mxu0 0.0
        %410 = vmatpush1.msra.mxu0 0.0
        %411 = vmatprep.subr.mxu0 0.0
        %412 = vmatpush1.msra.mxu0 0.0
        %413 = vmatprep.subr.mxu0 0.0
        %414 = vmatpush1.msra.mxu0 0.0
        %415 = vmatprep.subr.mxu0 0.0
        %416 = vmatpush1.msra.mxu0 0.0
        %417 = vmatprep.subr.mxu0 0.0
        %418 = vmatpush1.msra.mxu0 0.0
        %419 = vmatprep.subr.mxu0 0.0
        %420 = vmatpush1.msra.mxu0 0.0
        %421 = vmatprep.subr.mxu0 0.0
        %422 = vmatpush1.msra.mxu0 0.0
        %423 = vmatprep.subr.mxu0 0.0
        %424 = vmatpush1.msra.mxu0 0.0
        %425 = vmatprep.subr.mxu0 0.0
        %426 = vmatpush1.msra.mxu0 0.0
        %427 = vmatprep.subr.mxu0 0.0
        %428 = vmatpush1.msra.mxu0 0.0
        %429 = vmatprep.subr.mxu0 0.0
        %430 = vmatpush1.msra.mxu0 0.0
        %431 = vmatprep.subr.mxu0 0.0
        %432 = vmatpush1.msra.mxu0 0.0
        %433 = vmatprep.subr.mxu0 0.0
        %434 = vmatpush1.msra.mxu0 0.0
        %435 = vmatprep.subr.mxu0 0.0
        %436 = vmatpush1.msra.mxu0 0.0
        %437 = vmatprep.subr.mxu0 0.0
        %438 = vmatpush1.msra.mxu0 0.0
        %439 = vmatprep.subr.mxu0 0.0
        %440 = vmatpush1.msra.mxu0 0.0
        %441 = vmatprep.subr.mxu0 0.0
        %442 = vmatpush1.msra.mxu0 0.0
        %443 = vmatprep.subr.mxu0 0.0
        %444 = vmatpush1.msra.mxu0 0.0
        %445 = vmatprep.subr.mxu0 0.0
        %446 = vmatpush1.msra.mxu0 0.0
        %447 = vmatprep.subr.mxu0 0.0
        %448 = vmatpush1.msra.mxu0 0.0
        %449 = vmatprep.mubr.f32.mxu0 0.0
        %450 = vmatmul.mubr.f32.gmra.mrb[0].mxu0 %v383
        %v451 = vpop.f32.mrb[0].mxu0
        %v452 = vadd.f32 0.0, %v451
        %v453 = vpop.f32.mrb[0].mxu0
        %454 = vdwg.mxu0
        %455 = vst.msk [vmem:[%s200] sm:$0xff] %vm295, %v452
        %456 = vrot.lane.b32.xlu0 %v289, 120
        %v457 = vpop.permute.xlu0 %456
        %458 = vrot.lane.b32.xlu0 %v289, 88
        %v459 = vpop.permute.xlu0 %458
        %v460 = vsel %vm295, %v457, 0
        %v462 = vsel %vm295, %v459, 0
        %464 = vmatprep.subr.mxu0 0.0
        %465 = vmatpush1.xpose.msra.mxu0 %v462
        %466 = vmatprep.subr.mxu0 0.0
        %467 = vmatpush1.xpose.msra.mxu0 0.0
        %468 = vmatprep.subr.mxu0 0.0
        %469 = vmatpush1.xpose.msra.mxu0 0.0
        %470 = vmatprep.subr.mxu0 0.0
        %471 = vmatpush1.xpose.msra.mxu0 0.0
        %472 = vmatprep.subr.mxu0 0.0
        %473 = vmatpush1.xpose.msra.mxu0 0.0
        %474 = vmatprep.subr.mxu0 0.0
        %475 = vmatpush1.xpose.msra.mxu0 0.0
        %476 = vmatprep.subr.mxu0 0.0
        %477 = vmatpush1.xpose.msra.mxu0 0.0
        %478 = vmatprep.subr.mxu0 0.0
        %479 = vmatpush1.xpose.msra.mxu0 0.0
        %480 = vmatprep.subr.mxu0 0.0
        %481 = vmatpush1.xpose.msra.mxu0 0.0
        %482 = vmatprep.subr.mxu0 0.0
        %483 = vmatpush1.xpose.msra.mxu0 0.0
        %484 = vmatprep.subr.mxu0 0.0
        %485 = vmatpush1.xpose.msra.mxu0 0.0
        %486 = vmatprep.subr.mxu0 0.0
        %487 = vmatpush1.xpose.msra.mxu0 0.0
        %488 = vmatprep.subr.mxu0 0.0
        %489 = vmatpush1.xpose.msra.mxu0 0.0
        %490 = vmatprep.subr.mxu0 0.0
        %491 = vmatpush1.xpose.msra.mxu0 0.0
        %492 = vmatprep.subr.mxu0 0.0
        %493 = vmatpush1.xpose.msra.mxu0 0.0
        %494 = vmatprep.subr.mxu0 0.0
        %495 = vmatpush1.xpose.msra.mxu0 0.0
        %496 = vmatprep.subr.mxu0 0.0
        %497 = vmatpush1.xpose.msra.mxu0 0.0
        %498 = vmatprep.subr.mxu0 0.0
        %499 = vmatpush1.xpose.msra.mxu0 0.0
        %500 = vmatprep.subr.mxu0 0.0
        %501 = vmatpush1.xpose.msra.mxu0 0.0
        %502 = vmatprep.subr.mxu0 0.0
        %503 = vmatpush1.xpose.msra.mxu0 0.0
        %504 = vmatprep.subr.mxu0 0.0
        %505 = vmatpush1.xpose.msra.mxu0 0.0
        %506 = vmatprep.subr.mxu0 0.0
        %507 = vmatpush1.xpose.msra.mxu0 0.0
        %508 = vmatprep.subr.mxu0 0.0
        %509 = vmatpush1.xpose.msra.mxu0 0.0
        %510 = vmatprep.subr.mxu0 0.0
        %511 = vmatpush1.xpose.msra.mxu0 0.0
        %512 = vmatprep.subr.mxu0 0.0
        %513 = vmatpush1.xpose.msra.mxu0 0.0
        %514 = vmatprep.subr.mxu0 0.0
        %515 = vmatpush1.xpose.msra.mxu0 0.0
        %516 = vmatprep.subr.mxu0 0.0
        %517 = vmatpush1.xpose.msra.mxu0 0.0
        %518 = vmatprep.subr.mxu0 0.0
        %519 = vmatpush1.xpose.msra.mxu0 0.0
        %520 = vmatprep.subr.mxu0 0.0
        %521 = vmatpush1.xpose.msra.mxu0 0.0
        %522 = vmatprep.subr.mxu0 0.0
        %523 = vmatpush1.xpose.msra.mxu0 0.0
        %524 = vmatprep.subr.mxu0 0.0
        %525 = vmatpush1.xpose.msra.mxu0 0.0
        %526 = vmatprep.subr.mxu0 0.0
        %527 = vmatpush1.xpose.msra.mxu0 0.0
        %528 = vmatprep.mubr.f32.mxu0 0.0
        %529 = vmatmul.mubr.f32.gmra.mrb[0].mxu0 %v460
        %v530 = vpop.f32.mrb[0].mxu0
        %v531 = vadd.f32 0.0, %v530
        %v532 = vpop.f32.mrb[0].mxu0
        %533 = vdwg.mxu0
        %v534 = vsel %vm205, %v531, -inf
        %v535 = vsel %vm295, %v534, -inf
        %536 = vmax.xlane.f32.xlu0 %v535
        %v537 = vpop.xlane.xlu0 %536
        %v538 = vsub.f32 %v534, %v537
        %v539 = vmul.f32 %v538, 1.442695
        %v540 = vpow.pop %v539
        %v541 = vsel %vm295, %v540, 0.0
        %542 = vadd.xlane.f32.xlu0 %v541
        %v543 = vpop.xlane.xlu0 %542
        %v544 = vrcp.pop %v543
        %v545 = vmul.f32 %v540, %v544
        %546 = vrot.lane.b32.xlu0 %v211, 120
        %v547 = vpop.permute.xlu0 %546
        %v550 = vsel %vm295, %v545, 0
        %552 = vmatprep.subr.mxu0 0.0
        %553 = vmatpush1.msra.mxu0 %v547
        %554 = vmatprep.subr.mxu0 0.0
        %555 = vmatpush1.msra.mxu0 0.0
        %556 = vmatprep.subr.mxu0 0.0
        %557 = vmatpush1.msra.mxu0 0.0
        %558 = vmatprep.subr.mxu0 0.0
        %559 = vmatpush1.msra.mxu0 0.0
        %560 = vmatprep.subr.mxu0 0.0
        %561 = vmatpush1.msra.mxu0 0.0
        %562 = vmatprep.subr.mxu0 0.0
        %563 = vmatpush1.msra.mxu0 0.0
        %564 = vmatprep.subr.mxu0 0.0
        %565 = vmatpush1.msra.mxu0 0.0
        %566 = vmatprep.subr.mxu0 0.0
        %567 = vmatpush1.msra.mxu0 0.0
        %568 = vmatprep.subr.mxu0 0.0
        %569 = vmatpush1.msra.mxu0 0.0
        %570 = vmatprep.subr.mxu0 0.0
        %571 = vmatpush1.msra.mxu0 0.0
        %572 = vmatprep.subr.mxu0 0.0
        %573 = vmatpush1.msra.mxu0 0.0
        %574 = vmatprep.subr.mxu0 0.0
        %575 = vmatpush1.msra.mxu0 0.0
        %576 = vmatprep.subr.mxu0 0.0
        %577 = vmatpush1.msra.mxu0 0.0
        %578 = vmatprep.subr.mxu0 0.0
        %579 = vmatpush1.msra.mxu0 0.0
        %580 = vmatprep.subr.mxu0 0.0
        %581 = vmatpush1.msra.mxu0 0.0
        %582 = vmatprep.subr.mxu0 0.0
        %583 = vmatpush1.msra.mxu0 0.0
        %584 = vmatprep.subr.mxu0 0.0
        %585 = vmatpush1.msra.mxu0 0.0
        %586 = vmatprep.subr.mxu0 0.0
        %587 = vmatpush1.msra.mxu0 0.0
        %588 = vmatprep.subr.mxu0 0.0
        %589 = vmatpush1.msra.mxu0 0.0
        %590 = vmatprep.subr.mxu0 0.0
        %591 = vmatpush1.msra.mxu0 0.0
        %592 = vmatprep.subr.mxu0 0.0
        %593 = vmatpush1.msra.mxu0 0.0
        %594 = vmatprep.subr.mxu0 0.0
        %595 = vmatpush1.msra.mxu0 0.0
        %596 = vmatprep.subr.mxu0 0.0
        %597 = vmatpush1.msra.mxu0 0.0
        %598 = vmatprep.subr.mxu0 0.0
        %599 = vmatpush1.msra.mxu0 0.0
        %600 = vmatprep.subr.mxu0 0.0
        %601 = vmatpush1.msra.mxu0 0.0
        %602 = vmatprep.subr.mxu0 0.0
        %603 = vmatpush1.msra.mxu0 0.0
        %604 = vmatprep.subr.mxu0 0.0
        %605 = vmatpush1.msra.mxu0 0.0
        %606 = vmatprep.subr.mxu0 0.0
        %607 = vmatpush1.msra.mxu0 0.0
        %608 = vmatprep.subr.mxu0 0.0
        %609 = vmatpush1.msra.mxu0 0.0
        %610 = vmatprep.subr.mxu0 0.0
        %611 = vmatpush1.msra.mxu0 0.0
        %612 = vmatprep.subr.mxu0 0.0
        %613 = vmatpush1.msra.mxu0 0.0
        %614 = vmatprep.subr.mxu0 0.0
        %615 = vmatpush1.msra.mxu0 0.0
        %616 = vmatprep.mubr.f32.mxu0 0.0
        %617 = vmatmul.mubr.f32.gmra.mrb[0].mxu0 %v550
        %v618 = vpop.f32.mrb[0].mxu0
        %v619 = vadd.f32 0.0, %v618
        %v620 = vpop.f32.mrb[0].mxu0
        %621 = vdwg.mxu0
        %623 = vrot.lane.b32.xlu0 %v619, 8
        %v624 = vpop.permute.xlu0 %623
        %vm626 = vcmask 130112
        %627 = vst.msk [vmem:[%s200] sm:$0xff] %vm626, %v624
        %628 = vrot.lane.b32.xlu0 %v289, 112
        %v629 = vpop.permute.xlu0 %628
        %630 = vrot.lane.b32.xlu0 %v289, 80
        %v631 = vpop.permute.xlu0 %630
        %v632 = vsel %vm295, %v629, 0
        %v634 = vsel %vm295, %v631, 0
        %636 = vmatprep.subr.mxu0 0.0
        %637 = vmatpush1.xpose.msra.mxu0 %v634
        %638 = vmatprep.subr.mxu0 0.0
        %639 = vmatpush1.xpose.msra.mxu0 0.0
        %640 = vmatprep.subr.mxu0 0.0
        %641 = vmatpush1.xpose.msra.mxu0 0.0
        %642 = vmatprep.subr.mxu0 0.0
        %643 = vmatpush1.xpose.msra.mxu0 0.0
        %644 = vmatprep.subr.mxu0 0.0
        %645 = vmatpush1.xpose.msra.mxu0 0.0
        %646 = vmatprep.subr.mxu0 0.0
        %647 = vmatpush1.xpose.msra.mxu0 0.0
        %648 = vmatprep.subr.mxu0 0.0
        %649 = vmatpush1.xpose.msra.mxu0 0.0
        %650 = vmatprep.subr.mxu0 0.0
        %651 = vmatpush1.xpose.msra.mxu0 0.0
        %652 = vmatprep.subr.mxu0 0.0
        %653 = vmatpush1.xpose.msra.mxu0 0.0
        %654 = vmatprep.subr.mxu0 0.0
        %655 = vmatpush1.xpose.msra.mxu0 0.0
        %656 = vmatprep.subr.mxu0 0.0
        %657 = vmatpush1.xpose.msra.mxu0 0.0
        %658 = vmatprep.subr.mxu0 0.0
        %659 = vmatpush1.xpose.msra.mxu0 0.0
        %660 = vmatprep.subr.mxu0 0.0
        %661 = vmatpush1.xpose.msra.mxu0 0.0
        %662 = vmatprep.subr.mxu0 0.0
        %663 = vmatpush1.xpose.msra.mxu0 0.0
        %664 = vmatprep.subr.mxu0 0.0
        %665 = vmatpush1.xpose.msra.mxu0 0.0
        %666 = vmatprep.subr.mxu0 0.0
        %667 = vmatpush1.xpose.msra.mxu0 0.0
        %668 = vmatprep.subr.mxu0 0.0
        %669 = vmatpush1.xpose.msra.mxu0 0.0
        %670 = vmatprep.subr.mxu0 0.0
        %671 = vmatpush1.xpose.msra.mxu0 0.0
        %672 = vmatprep.subr.mxu0 0.0
        %673 = vmatpush1.xpose.msra.mxu0 0.0
        %674 = vmatprep.subr.mxu0 0.0
        %675 = vmatpush1.xpose.msra.mxu0 0.0
        %676 = vmatprep.subr.mxu0 0.0
        %677 = vmatpush1.xpose.msra.mxu0 0.0
        %678 = vmatprep.subr.mxu0 0.0
        %679 = vmatpush1.xpose.msra.mxu0 0.0
        %680 = vmatprep.subr.mxu0 0.0
        %681 = vmatpush1.xpose.msra.mxu0 0.0
        %682 = vmatprep.subr.mxu0 0.0
        %683 = vmatpush1.xpose.msra.mxu0 0.0
        %684 = vmatprep.subr.mxu0 0.0
        %685 = vmatpush1.xpose.msra.mxu0 0.0
        %686 = vmatprep.subr.mxu0 0.0
        %687 = vmatpush1.xpose.msra.mxu0 0.0
        %688 = vmatprep.subr.mxu0 0.0
        %689 = vmatpush1.xpose.msra.mxu0 0.0
        %690 = vmatprep.subr.mxu0 0.0
        %691 = vmatpush1.xpose.msra.mxu0 0.0
        %692 = vmatprep.subr.mxu0 0.0
        %693 = vmatpush1.xpose.msra.mxu0 0.0
        %694 = vmatprep.subr.mxu0 0.0
        %695 = vmatpush1.xpose.msra.mxu0 0.0
        %696 = vmatprep.subr.mxu0 0.0
        %697 = vmatpush1.xpose.msra.mxu0 0.0
        %698 = vmatprep.subr.mxu0 0.0
        %699 = vmatpush1.xpose.msra.mxu0 0.0
        %700 = vmatprep.mubr.f32.mxu0 0.0
        %701 = vmatmul.mubr.f32.gmra.mrb[0].mxu0 %v632
        %v702 = vpop.f32.mrb[0].mxu0
        %v703 = vadd.f32 0.0, %v702
        %v704 = vpop.f32.mrb[0].mxu0
        %705 = vdwg.mxu0
        %v706 = vsel %vm205, %v703, -inf
        %v707 = vsel %vm295, %v706, -inf
        %708 = vmax.xlane.f32.xlu0 %v707
        %v709 = vpop.xlane.xlu0 %708
        %v710 = vsub.f32 %v706, %v709
        %v711 = vmul.f32 %v710, 1.442695
        %v712 = vpow.pop %v711
        %v713 = vsel %vm295, %v712, 0.0
        %714 = vadd.xlane.f32.xlu0 %v713
        %v715 = vpop.xlane.xlu0 %714
        %v716 = vrcp.pop %v715
        %v717 = vmul.f32 %v712, %v716
        %718 = vrot.lane.b32.xlu0 %v211, 112
        %v719 = vpop.permute.xlu0 %718
        %v722 = vsel %vm295, %v717, 0
        %724 = vmatprep.subr.mxu0 0.0
        %725 = vmatpush1.msra.mxu0 %v719
        %726 = vmatprep.subr.mxu0 0.0
        %727 = vmatpush1.msra.mxu0 0.0
        %728 = vmatprep.subr.mxu0 0.0
        %729 = vmatpush1.msra.mxu0 0.0
        %730 = vmatprep.subr.mxu0 0.0
        %731 = vmatpush1.msra.mxu0 0.0
        %732 = vmatprep.subr.mxu0 0.0
        %733 = vmatpush1.msra.mxu0 0.0
        %734 = vmatprep.subr.mxu0 0.0
        %735 = vmatpush1.msra.mxu0 0.0
        %736 = vmatprep.subr.mxu0 0.0
        %737 = vmatpush1.msra.mxu0 0.0
        %738 = vmatprep.subr.mxu0 0.0
        %739 = vmatpush1.msra.mxu0 0.0
        %740 = vmatprep.subr.mxu0 0.0
        %741 = vmatpush1.msra.mxu0 0.0
        %742 = vmatprep.subr.mxu0 0.0
        %743 = vmatpush1.msra.mxu0 0.0
        %744 = vmatprep.subr.mxu0 0.0
        %745 = vmatpush1.msra.mxu0 0.0
        %746 = vmatprep.subr.mxu0 0.0
        %747 = vmatpush1.msra.mxu0 0.0
        %748 = vmatprep.subr.mxu0 0.0
        %749 = vmatpush1.msra.mxu0 0.0
        %750 = vmatprep.subr.mxu0 0.0
        %751 = vmatpush1.msra.mxu0 0.0
        %752 = vmatprep.subr.mxu0 0.0
        %753 = vmatpush1.msra.mxu0 0.0
        %754 = vmatprep.subr.mxu0 0.0
        %755 = vmatpush1.msra.mxu0 0.0
        %756 = vmatprep.subr.mxu0 0.0
        %757 = vmatpush1.msra.mxu0 0.0
        %758 = vmatprep.subr.mxu0 0.0
        %759 = vmatpush1.msra.mxu0 0.0
        %760 = vmatprep.subr.mxu0 0.0
        %761 = vmatpush1.msra.mxu0 0.0
        %762 = vmatprep.subr.mxu0 0.0
        %763 = vmatpush1.msra.mxu0 0.0
        %764 = vmatprep.subr.mxu0 0.0
        %765 = vmatpush1.msra.mxu0 0.0
        %766 = vmatprep.subr.mxu0 0.0
        %767 = vmatpush1.msra.mxu0 0.0
        %768 = vmatprep.subr.mxu0 0.0
        %769 = vmatpush1.msra.mxu0 0.0
        %770 = vmatprep.subr.mxu0 0.0
        %771 = vmatpush1.msra.mxu0 0.0
        %772 = vmatprep.subr.mxu0 0.0
        %773 = vmatpush1.msra.mxu0 0.0
        %774 = vmatprep.subr.mxu0 0.0
        %775 = vmatpush1.msra.mxu0 0.0
        %776 = vmatprep.subr.mxu0 0.0
        %777 = vmatpush1.msra.mxu0 0.0
        %778 = vmatprep.subr.mxu0 0.0
        %779 = vmatpush1.msra.mxu0 0.0
        %780 = vmatprep.subr.mxu0 0.0
        %781 = vmatpush1.msra.mxu0 0.0
        %782 = vmatprep.subr.mxu0 0.0
        %783 = vmatpush1.msra.mxu0 0.0
        %784 = vmatprep.subr.mxu0 0.0
        %785 = vmatpush1.msra.mxu0 0.0
        %786 = vmatprep.subr.mxu0 0.0
        %787 = vmatpush1.msra.mxu0 0.0
        %788 = vmatprep.mubr.f32.mxu0 0.0
        %789 = vmatmul.mubr.f32.gmra.mrb[0].mxu0 %v722
        %v790 = vpop.f32.mrb[0].mxu0
        %v791 = vadd.f32 0.0, %v790
        %v792 = vpop.f32.mrb[0].mxu0
        %793 = vdwg.mxu0
        %795 = vrot.lane.b32.xlu0 %v791, 16
        %v796 = vpop.permute.xlu0 %795
        %vm798 = vcmask 195712
        %799 = vst.msk [vmem:[%s200] sm:$0xff] %vm798, %v796
        %800 = vrot.lane.b32.xlu0 %v289, 104
        %v801 = vpop.permute.xlu0 %800
        %802 = vrot.lane.b32.xlu0 %v289, 72
        %v803 = vpop.permute.xlu0 %802
        %v804 = vsel %vm295, %v801, 0
        %v806 = vsel %vm295, %v803, 0
        %808 = vmatprep.subr.mxu0 0.0
        %809 = vmatpush1.xpose.msra.mxu0 %v806
        %810 = vmatprep.subr.mxu0 0.0
        %811 = vmatpush1.xpose.msra.mxu0 0.0
        %812 = vmatprep.subr.mxu0 0.0
        %813 = vmatpush1.xpose.msra.mxu0 0.0
        %814 = vmatprep.subr.mxu0 0.0
        %815 = vmatpush1.xpose.msra.mxu0 0.0
        %816 = vmatprep.subr.mxu0 0.0
        %817 = vmatpush1.xpose.msra.mxu0 0.0
        %818 = vmatprep.subr.mxu0 0.0
        %819 = vmatpush1.xpose.msra.mxu0 0.0
        %820 = vmatprep.subr.mxu0 0.0
        %821 = vmatpush1.xpose.msra.mxu0 0.0
        %822 = vmatprep.subr.mxu0 0.0
        %823 = vmatpush1.xpose.msra.mxu0 0.0
        %824 = vmatprep.subr.mxu0 0.0
        %825 = vmatpush1.xpose.msra.mxu0 0.0
        %826 = vmatprep.subr.mxu0 0.0
        %827 = vmatpush1.xpose.msra.mxu0 0.0
        %828 = vmatprep.subr.mxu0 0.0
        %829 = vmatpush1.xpose.msra.mxu0 0.0
        %830 = vmatprep.subr.mxu0 0.0
        %831 = vmatpush1.xpose.msra.mxu0 0.0
        %832 = vmatprep.subr.mxu0 0.0
        %833 = vmatpush1.xpose.msra.mxu0 0.0
        %834 = vmatprep.subr.mxu0 0.0
        %835 = vmatpush1.xpose.msra.mxu0 0.0
        %836 = vmatprep.subr.mxu0 0.0
        %837 = vmatpush1.xpose.msra.mxu0 0.0
        %838 = vmatprep.subr.mxu0 0.0
        %839 = vmatpush1.xpose.msra.mxu0 0.0
        %840 = vmatprep.subr.mxu0 0.0
        %841 = vmatpush1.xpose.msra.mxu0 0.0
        %842 = vmatprep.subr.mxu0 0.0
        %843 = vmatpush1.xpose.msra.mxu0 0.0
        %844 = vmatprep.subr.mxu0 0.0
        %845 = vmatpush1.xpose.msra.mxu0 0.0
        %846 = vmatprep.subr.mxu0 0.0
        %847 = vmatpush1.xpose.msra.mxu0 0.0
        %848 = vmatprep.subr.mxu0 0.0
        %849 = vmatpush1.xpose.msra.mxu0 0.0
        %850 = vmatprep.subr.mxu0 0.0
        %851 = vmatpush1.xpose.msra.mxu0 0.0
        %852 = vmatprep.subr.mxu0 0.0
        %853 = vmatpush1.xpose.msra.mxu0 0.0
        %854 = vmatprep.subr.mxu0 0.0
        %855 = vmatpush1.xpose.msra.mxu0 0.0
        %856 = vmatprep.subr.mxu0 0.0
        %857 = vmatpush1.xpose.msra.mxu0 0.0
        %858 = vmatprep.subr.mxu0 0.0
        %859 = vmatpush1.xpose.msra.mxu0 0.0
        %860 = vmatprep.subr.mxu0 0.0
        %861 = vmatpush1.xpose.msra.mxu0 0.0
        %862 = vmatprep.subr.mxu0 0.0
        %863 = vmatpush1.xpose.msra.mxu0 0.0
        %864 = vmatprep.subr.mxu0 0.0
        %865 = vmatpush1.xpose.msra.mxu0 0.0
        %866 = vmatprep.subr.mxu0 0.0
        %867 = vmatpush1.xpose.msra.mxu0 0.0
        %868 = vmatprep.subr.mxu0 0.0
        %869 = vmatpush1.xpose.msra.mxu0 0.0
        %870 = vmatprep.subr.mxu0 0.0
        %871 = vmatpush1.xpose.msra.mxu0 0.0
        %872 = vmatprep.mubr.f32.mxu0 0.0
        %873 = vmatmul.mubr.f32.gmra.mrb[0].mxu0 %v804
        %v874 = vpop.f32.mrb[0].mxu0
        %v875 = vadd.f32 0.0, %v874
        %v876 = vpop.f32.mrb[0].mxu0
        %877 = vdwg.mxu0
        %v878 = vsel %vm205, %v875, -inf
        %v879 = vsel %vm295, %v878, -inf
        %880 = vmax.xlane.f32.xlu0 %v879
        %v881 = vpop.xlane.xlu0 %880
        %v882 = vsub.f32 %v878, %v881
        %v883 = vmul.f32 %v882, 1.442695
        %v884 = vpow.pop %v883
        %v885 = vsel %vm295, %v884, 0.0
        %886 = vadd.xlane.f32.xlu0 %v885
        %v887 = vpop.xlane.xlu0 %886
        %v888 = vrcp.pop %v887
        %v889 = vmul.f32 %v884, %v888
        %890 = vrot.lane.b32.xlu0 %v211, 104
        %v891 = vpop.permute.xlu0 %890
        %v894 = vsel %vm295, %v889, 0
        %896 = vmatprep.subr.mxu0 0.0
        %897 = vmatpush1.msra.mxu0 %v891
        %898 = vmatprep.subr.mxu0 0.0
        %899 = vmatpush1.msra.mxu0 0.0
        %900 = vmatprep.subr.mxu0 0.0
        %901 = vmatpush1.msra.mxu0 0.0
        %902 = vmatprep.subr.mxu0 0.0
        %903 = vmatpush1.msra.mxu0 0.0
        %904 = vmatprep.subr.mxu0 0.0
        %905 = vmatpush1.msra.mxu0 0.0
        %906 = vmatprep.subr.mxu0 0.0
        %907 = vmatpush1.msra.mxu0 0.0
        %908 = vmatprep.subr.mxu0 0.0
        %909 = vmatpush1.msra.mxu0 0.0
        %910 = vmatprep.subr.mxu0 0.0
        %911 = vmatpush1.msra.mxu0 0.0
        %912 = vmatprep.subr.mxu0 0.0
        %913 = vmatpush1.msra.mxu0 0.0
        %914 = vmatprep.subr.mxu0 0.0
        %915 = vmatpush1.msra.mxu0 0.0
        %916 = vmatprep.subr.mxu0 0.0
        %917 = vmatpush1.msra.mxu0 0.0
        %918 = vmatprep.subr.mxu0 0.0
        %919 = vmatpush1.msra.mxu0 0.0
        %920 = vmatprep.subr.mxu0 0.0
        %921 = vmatpush1.msra.mxu0 0.0
        %922 = vmatprep.subr.mxu0 0.0
        %923 = vmatpush1.msra.mxu0 0.0
        %924 = vmatprep.subr.mxu0 0.0
        %925 = vmatpush1.msra.mxu0 0.0
        %926 = vmatprep.subr.mxu0 0.0
        %927 = vmatpush1.msra.mxu0 0.0
        %928 = vmatprep.subr.mxu0 0.0
        %929 = vmatpush1.msra.mxu0 0.0
        %930 = vmatprep.subr.mxu0 0.0
        %931 = vmatpush1.msra.mxu0 0.0
        %932 = vmatprep.subr.mxu0 0.0
        %933 = vmatpush1.msra.mxu0 0.0
        %934 = vmatprep.subr.mxu0 0.0
        %935 = vmatpush1.msra.mxu0 0.0
        %936 = vmatprep.subr.mxu0 0.0
        %937 = vmatpush1.msra.mxu0 0.0
        %938 = vmatprep.subr.mxu0 0.0
        %939 = vmatpush1.msra.mxu0 0.0
        %940 = vmatprep.subr.mxu0 0.0
        %941 = vmatpush1.msra.mxu0 0.0
        %942 = vmatprep.subr.mxu0 0.0
        %943 = vmatpush1.msra.mxu0 0.0
        %944 = vmatprep.subr.mxu0 0.0
        %945 = vmatpush1.msra.mxu0 0.0
        %946 = vmatprep.subr.mxu0 0.0
        %947 = vmatpush1.msra.mxu0 0.0
        %948 = vmatprep.subr.mxu0 0.0
        %949 = vmatpush1.msra.mxu0 0.0
        %950 = vmatprep.subr.mxu0 0.0
        %951 = vmatpush1.msra.mxu0 0.0
        %952 = vmatprep.subr.mxu0 0.0
        %953 = vmatpush1.msra.mxu0 0.0
        %954 = vmatprep.subr.mxu0 0.0
        %955 = vmatpush1.msra.mxu0 0.0
        %956 = vmatprep.subr.mxu0 0.0
        %957 = vmatpush1.msra.mxu0 0.0
        %958 = vmatprep.subr.mxu0 0.0
        %959 = vmatpush1.msra.mxu0 0.0
        %960 = vmatprep.mubr.f32.mxu0 0.0
        %961 = vmatmul.mubr.f32.gmra.mrb[0].mxu0 %v894
        %v962 = vpop.f32.mrb[0].mxu0
        %v963 = vadd.f32 0.0, %v962
        %v964 = vpop.f32.mrb[0].mxu0
        %965 = vdwg.mxu0
        %967 = vrot.lane.b32.xlu0 %v963, 24
        %v968 = vpop.permute.xlu0 %967
        %vm970 = vcmask 261312
        %971 = vst.msk [vmem:[%s200] sm:$0xff] %vm970, %v968
        %s972 = sand.u32 %s97, 1
        %s973 = scalar_lea.sflag [#allocation4], %s972
        %s974 = sand.u32 %s97, 1
        %s975 = smul.addr %s974, 8
        %s976 = scalar_lea.vmem [#allocation7], %s975
        // Predicated region
        $region41: #{tpu_custom_call.1} parent=31 // pred_check
          %p977 = pneg %p107
        $region42: #{tpu_custom_call.1} parent=31 // pred_check_branch
          %979 = sbr.rel (%p977) target = $region44
        $region43: #{tpu_custom_call.1} parent=31 // pred_region
          %s981 = ssub.s32 128, 128
          %982 = vsyncadd %s973, %s981
          %s983 = smul.addr %s21, 128
          %s984 = scalar_lea.hbm %s3, %s983
          %s986 = sshll.u32 %s976, 4
          %s987 = int_to_ptr.vmem [resolvable:$true] %s986
          %989 = dma.vmem_to_hbm [thread:$0]  %s987, 128, %s984, %s973
        $region44: #{tpu_custom_call.1} parent=31 // pred_fallthru
          _
      $region32: #{tpu_custom_call.1} parent=5 // pred_fallthru
        _
      %p990 = scmp.le.s32.totalorder 2, %s16
      // Predicated region
      $region45: #{tpu_custom_call.1} parent=5 // pred_check
        %p991 = pneg %p990
      $region46: #{tpu_custom_call.1} parent=5 // pred_check_branch
        %993 = sbr.rel (%p991) target = $region48
      $region47: #{tpu_custom_call.1} parent=5 // pred_region
        %s994 = ssub.s32 %s16, 2
        // Predicated region
        $region49: #{tpu_custom_call.1} parent=47 // pred_check
          %p995 = pneg %p113
        $region50: #{tpu_custom_call.1} parent=47 // pred_check_branch
          %997 = sbr.rel (%p995) target = $region52
        $region51: #{tpu_custom_call.1} parent=47 // pred_region
          %s998 = sand.u32 %s98, 1
          %s999 = scalar_lea.sflag [#allocation4], %s998
          %s1000 = sand.u32 %s98, 1
          %s1001 = smul.addr %s1000, 8
          %s1002 = scalar_lea.vmem [#allocation7], %s1001
          %1003 = dma.done %s999, 128
        $region52: #{tpu_custom_call.1} parent=47 // pred_fallthru
          _
      $region48: #{tpu_custom_call.1} parent=5 // pred_fallthru
        _
    $region6: #{tpu_custom_call.1} parent=1 // loop_footer
      %s20 = sadd.s32 1, %s16
    $region7: #{tpu_custom_call.1} parent=1 // loop_footer_branch
      %15 = sbr.rel target = $region3
    $region8: #{tpu_custom_call.1} parent=1 // loop_exit
      _
    %1004 = vsyncpa [#allocation3], 1
    %s1005 = scalar_lea.sflag [#allocation3], 1
    %1006 = vsyncpa %s1005, 1
    %1007 = vsyncpa [#allocation6], 1
    %1008 = vsyncpa [#allocation4], 1
    %s1009 = scalar_lea.sflag [#allocation4], 1
    %1010 = vsyncpa %s1009, 1

</llo_original>
